<compile_context>
chip_gen: v6e
topology: v6e:2x2x1
jax: 0.10.0
libtpu: 0.0.40
codegen_flags: <defaults>
</compile_context>

<pallas_src>
import jax
import jax.numpy as jnp
from jax.experimental import pallas as pl
from jax.experimental.pallas import tpu as pltpu


def _mlp_kernel(x_ref, w1_ref, b1_ref, w2_ref, b2_ref, w3_ref, b3_ref, o_ref):
    # x arrives as f32 straight from HBM; cast to bf16 on the VPU (hidden under
    # the DMA) so the MXU matmuls run at bf16 rate without an extra wrapper
    # pass over x.
    x = x_ref[...].astype(jnp.bfloat16)                               # (TM, F)

    # fc1: bf16 MXU, f32 accumulate; bias + ReLU in f32.
    h1 = jnp.dot(x, w1_ref[...], preferred_element_type=jnp.float32)  # (TM, H)
    h1 = jnp.maximum(h1 + b1_ref[...], 0.0)

    # fc2: bf16 MXU, f32 accumulate; bias + ReLU in f32.
    h2 = jnp.dot(h1.astype(jnp.bfloat16), w2_ref[...],
                 preferred_element_type=jnp.float32)                  # (TM, H)
    h2 = jnp.maximum(h2 + b2_ref[...], 0.0)

    # fc3: contract w3 (1,H) with h2 (TM,H) over H (q@k^T-style dimension
    # numbers) so the logits come out as (1, TM) — batch on lanes — giving a
    # lane-dense output block (unmasked stores).
    logits = jax.lax.dot_general(
        w3_ref[...], h2, (((1,), (1,)), ((), ())),
        preferred_element_type=jnp.float32)                           # (1, TM)
    o_ref[...] = jax.nn.sigmoid(logits + b3_ref[0, 0])


def binary_classifier_forward(x, params, *, tm_max=2048):
    """x: (B, input_size) f32.  params: (in, out) weights, (1, out) biases."""
    B, F = x.shape
    assert tm_max % 128 == 0, "tile must be lane-aligned when it tiles the batch"

    # Batch tile: TM rows per grid step when B is large (TM multiple of 128 so
    # both the f32 x tile and the (1, TM) output tile are aligned); otherwise
    # the whole batch in one block (block == full dims, no padding needed).
    TM = tm_max if B > tm_max else B
    grid = (pl.cdiv(B, TM),)

    # Tiny one-time casts of the matmul weights to bf16; biases and the fc3
    # row stay f32 for the epilogue.  x itself is NOT touched in the wrapper.
    w1 = params["w1"].astype(jnp.bfloat16)                 # (F, H)
    w2 = params["w2"].astype(jnp.bfloat16)                 # (H, H)
    b1 = params["b1"].astype(jnp.float32)                  # (1, H)
    b2 = params["b2"].astype(jnp.float32)                  # (1, H)
    w3_row = params["w3"].T.astype(jnp.float32)            # (1, H)
    b3 = params["b3"].reshape(1, 1).astype(jnp.float32)    # scalar -> SMEM

    out = pl.pallas_call(
        _mlp_kernel,
        out_shape=jax.ShapeDtypeStruct((1, B), jnp.float32),
        grid=grid,
        in_specs=[
            pl.BlockSpec((TM, F), lambda i: (i, 0)),        # x: streamed over batch
            pl.BlockSpec(w1.shape, lambda i: (0, 0)),       # constant block index ->
            pl.BlockSpec(b1.shape, lambda i: (0, 0)),       #   weights stay resident
            pl.BlockSpec(w2.shape, lambda i: (0, 0)),       #   in VMEM (no per-step
            pl.BlockSpec(b2.shape, lambda i: (0, 0)),       #   re-DMA)
            pl.BlockSpec(w3_row.shape, lambda i: (0, 0)),
            pl.BlockSpec(memory_space=pltpu.MemorySpace.SMEM),  # b3 scalar
        ],
        out_specs=pl.BlockSpec((1, TM), lambda i: (0, i)),  # lane-dense logits
        compiler_params=pltpu.CompilerParams(
            dimension_semantics=("parallel",),
            vmem_limit_bytes=32 * 1024 * 1024,
        ),
    )(x, w1, b1, w2, b2, w3_row, b3)

    return out.reshape(B, 1)


def init_params(key, input_size=27, hidden_size=64):
    """Deterministic init mirroring nn.Linear's U(-1/sqrt(fan_in), 1/sqrt(fan_in))."""
    ks = jax.random.split(key, 6)

    def linear(kw, kb, fan_in, fan_out):
        bound = 1.0 / jnp.sqrt(jnp.asarray(fan_in, jnp.float32))
        w = jax.random.uniform(kw, (fan_in, fan_out), jnp.float32, -bound, bound)
        b = jax.random.uniform(kb, (1, fan_out), jnp.float32, -bound, bound)
        return w, b

    w1, b1 = linear(ks[0], ks[1], input_size, hidden_size)
    w2, b2 = linear(ks[2], ks[3], hidden_size, hidden_size)
    w3, b3 = linear(ks[4], ks[5], hidden_size, 1)
    return {"w1": w1, "b1": b1, "w2": w2, "b2": b2, "w3": w3, "b3": b3}


def _ref_bf16_policy(x, params):
    """Reference with the kernel's precision policy (bf16 matmuls, f32 acc)."""
    xb = x.astype(jnp.bfloat16)
    h1 = jnp.maximum(
        jnp.dot(xb, params["w1"].astype(jnp.bfloat16),
                preferred_element_type=jnp.float32) + params["b1"], 0.0)
    h2 = jnp.maximum(
        jnp.dot(h1.astype(jnp.bfloat16), params["w2"].astype(jnp.bfloat16),
                preferred_element_type=jnp.float32) + params["b2"], 0.0)
    return jax.nn.sigmoid(h2 @ params["w3"] + params["b3"])


def _ref_f32(x, params):
    """Pure f32 reference matching the PyTorch module exactly."""
    r = jnp.maximum(x @ params["w1"] + params["b1"], 0.0)
    r = jnp.maximum(r @ params["w2"] + params["b2"], 0.0)
    return jax.nn.sigmoid(r @ params["w3"] + params["b3"])


if __name__ == "__main__":
    key = jax.random.PRNGKey(0)
    k_x, k_p, k_x2 = jax.random.split(key, 3)

    B, INPUT, HIDDEN = 8, 27, 64
    x = jax.random.normal(k_x, (B, INPUT), jnp.float32)
    params = init_params(k_p, INPUT, HIDDEN)

    # Small batch: single whole-array block.
    out = jax.block_until_ready(binary_classifier_forward(x, params))
    assert out.shape == (B, 1)
    assert jnp.allclose(out, _ref_bf16_policy(x, params), atol=1e-3, rtol=1e-3)
    assert jnp.allclose(out, _ref_f32(x, params), atol=5e-2, rtol=5e-2)

    # Tiled path: multi-step grid with a partial boundary block (no padding).
    B2 = 300
    x2 = jax.random.normal(k_x2, (B2, INPUT), jnp.float32)
    out2 = jax.block_until_ready(
        binary_classifier_forward(x2, params, tm_max=128))
    assert out2.shape == (B2, 1)
    assert jnp.allclose(out2, _ref_bf16_policy(x2, params), atol=1e-3, rtol=1e-3)
    assert jnp.allclose(out2, _ref_f32(x2, params), atol=5e-2, rtol=5e-2)

    print("KERNEL_OK")
</pallas_src>

<mosaic_0001>
module attributes {stable_mosaic.version = 11 : i64} {
  func.func @_mlp_kernel(%arg0: i32, %arg1: memref<8x27xf32, #tpu.memory_space<vmem>>, %arg2: memref<27x64xbf16, #tpu.memory_space<vmem>>, %arg3: memref<1x64xf32, #tpu.memory_space<vmem>>, %arg4: memref<64x64xbf16, #tpu.memory_space<vmem>>, %arg5: memref<1x64xf32, #tpu.memory_space<vmem>>, %arg6: memref<1x64xf32, #tpu.memory_space<vmem>>, %arg7: memref<1x1xf32, #tpu.memory_space<smem>>, %arg8: memref<1x8xf32, #tpu.memory_space<vmem>>) attributes {dimension_semantics = [#tpu.dimension_semantics<parallel>], iteration_bounds = array<i64: 1>, scalar_prefetch = 0 : i64, scratch_operands = 0 : i64, tpu.core_type = #tpu.core_type<tc>, window_params = [{transform_indices = @transform_0, window_bounds = array<i64: 8, 27>}, {pipeline_mode = #tpu.pipeline_mode<synchronous>, transform_indices = @transform_1, window_bounds = array<i64: 27, 64>}, {pipeline_mode = #tpu.pipeline_mode<synchronous>, transform_indices = @transform_2, window_bounds = array<i64: 1, 64>}, {pipeline_mode = #tpu.pipeline_mode<synchronous>, transform_indices = @transform_3, window_bounds = array<i64: 64, 64>}, {pipeline_mode = #tpu.pipeline_mode<synchronous>, transform_indices = @transform_4, window_bounds = array<i64: 1, 64>}, {pipeline_mode = #tpu.pipeline_mode<synchronous>, transform_indices = @transform_5, window_bounds = array<i64: 1, 64>}, {transform_indices = @transform_6, window_bounds = array<i64: 1, 1>}, {transform_indices = @transform_7, window_bounds = array<i64: 1, 8>}]} {
    %c0 = arith.constant 0 : index
    %c0_0 = arith.constant 0 : index
    %0 = vector.load %arg1[%c0, %c0_0] : memref<8x27xf32, #tpu.memory_space<vmem>>, vector<8x27xf32>
    %1 = arith.truncf %0 : vector<8x27xf32> to vector<8x27xbf16>
    %c0_1 = arith.constant 0 : index
    %c0_2 = arith.constant 0 : index
    %2 = vector.load %arg2[%c0_1, %c0_2] : memref<27x64xbf16, #tpu.memory_space<vmem>>, vector<27x64xbf16>
    %cst = arith.constant dense<0.000000e+00> : vector<8x64xf32>
    %3 = tpu.matmul %1, %2, %cst {dimension_numbers = #tpu.dot_dimension_numbers<[1], [0], [0], [1], [0, 0, 1, 1], [], []>} : vector<8x27xbf16>, vector<27x64xbf16>, vector<8x64xf32> -> vector<8x64xf32>
    %c0_3 = arith.constant 0 : index
    %c0_4 = arith.constant 0 : index
    %4 = vector.load %arg3[%c0_3, %c0_4] : memref<1x64xf32, #tpu.memory_space<vmem>>, vector<1x64xf32>
    %5 = vector.broadcast %4 : vector<1x64xf32> to vector<8x64xf32>
    %6 = arith.addf %3, %5 : vector<8x64xf32>
    %cst_5 = arith.constant 0.000000e+00 : f32
    %7 = vector.broadcast %cst_5 : f32 to vector<8x64xf32>
    %8 = arith.maximumf %6, %7 : vector<8x64xf32>
    %9 = arith.truncf %8 : vector<8x64xf32> to vector<8x64xbf16>
    %c0_6 = arith.constant 0 : index
    %c0_7 = arith.constant 0 : index
    %10 = vector.load %arg4[%c0_6, %c0_7] : memref<64x64xbf16, #tpu.memory_space<vmem>>, vector<64x64xbf16>
    %cst_8 = arith.constant dense<0.000000e+00> : vector<8x64xf32>
    %11 = tpu.matmul %9, %10, %cst_8 {dimension_numbers = #tpu.dot_dimension_numbers<[1], [0], [0], [1], [0, 0, 1, 1], [], []>} : vector<8x64xbf16>, vector<64x64xbf16>, vector<8x64xf32> -> vector<8x64xf32>
    %c0_9 = arith.constant 0 : index
    %c0_10 = arith.constant 0 : index
    %12 = vector.load %arg5[%c0_9, %c0_10] : memref<1x64xf32, #tpu.memory_space<vmem>>, vector<1x64xf32>
    %13 = vector.broadcast %12 : vector<1x64xf32> to vector<8x64xf32>
    %14 = arith.addf %11, %13 : vector<8x64xf32>
    %cst_11 = arith.constant 0.000000e+00 : f32
    %15 = vector.broadcast %cst_11 : f32 to vector<8x64xf32>
    %16 = arith.maximumf %14, %15 : vector<8x64xf32>
    %c0_12 = arith.constant 0 : index
    %c0_13 = arith.constant 0 : index
    %17 = vector.load %arg6[%c0_12, %c0_13] : memref<1x64xf32, #tpu.memory_space<vmem>>, vector<1x64xf32>
    %cst_14 = arith.constant dense<0.000000e+00> : vector<1x8xf32>
    %18 = tpu.matmul %17, %16, %cst_14 {dimension_numbers = #tpu.dot_dimension_numbers<[1], [1], [0], [0], [0, 0, 1, 0], [], []>} : vector<1x64xf32>, vector<8x64xf32>, vector<1x8xf32> -> vector<1x8xf32>
    %c0_15 = arith.constant 0 : index
    %c0_16 = arith.constant 0 : index
    %19 = memref.load %arg7[%c0_15, %c0_16] : memref<1x1xf32, #tpu.memory_space<smem>>
    %20 = vector.broadcast %19 : f32 to vector<1x8xf32>
    %21 = arith.addf %18, %20 : vector<1x8xf32>
    %22 = arith.negf %21 : vector<1x8xf32>
    %23 = math.exp %22 : vector<1x8xf32>
    %cst_17 = arith.constant 1.000000e+00 : f32
    %24 = vector.broadcast %cst_17 : f32 to vector<1x8xf32>
    %25 = arith.addf %24, %23 : vector<1x8xf32>
    %26 = arith.divf %24, %25 : vector<1x8xf32>
    %c0_18 = arith.constant 0 : index
    %c0_19 = arith.constant 0 : index
    %27 = vector.load %arg8[%c0_18, %c0_19] : memref<1x8xf32, #tpu.memory_space<vmem>>, vector<1x8xf32>
    tpu.vector_store %arg8[%c0_18, %c0_19], %26 {strides = array<i32>} : memref<1x8xf32, #tpu.memory_space<vmem>>, vector<1x8xf32>,
    return
  }
  func.func @transform_0(%arg0: i32) -> (i32, i32) {
    %c0_i32 = arith.constant 0 : i32
    %c0_i32_0 = arith.constant 0 : i32
    return %arg0, %c0_i32 : i32, i32
  }
  func.func @transform_1(%arg0: i32) -> (i32, i32) {
    %c0_i32 = arith.constant 0 : i32
    %c0_i32_0 = arith.constant 0 : i32
    %c0_i32_1 = arith.constant 0 : i32
    return %c0_i32, %c0_i32_0 : i32, i32
  }
  func.func @transform_2(%arg0: i32) -> (i32, i32) {
    %c0_i32 = arith.constant 0 : i32
    %c0_i32_0 = arith.constant 0 : i32
    %c0_i32_1 = arith.constant 0 : i32
    return %c0_i32, %c0_i32_0 : i32, i32
  }
  func.func @transform_3(%arg0: i32) -> (i32, i32) {
    %c0_i32 = arith.constant 0 : i32
    %c0_i32_0 = arith.constant 0 : i32
    %c0_i32_1 = arith.constant 0 : i32
    return %c0_i32, %c0_i32_0 : i32, i32
  }
  func.func @transform_4(%arg0: i32) -> (i32, i32) {
    %c0_i32 = arith.constant 0 : i32
    %c0_i32_0 = arith.constant 0 : i32
    %c0_i32_1 = arith.constant 0 : i32
    return %c0_i32, %c0_i32_0 : i32, i32
  }
  func.func @transform_5(%arg0: i32) -> (i32, i32) {
    %c0_i32 = arith.constant 0 : i32
    %c0_i32_0 = arith.constant 0 : i32
    %c0_i32_1 = arith.constant 0 : i32
    return %c0_i32, %c0_i32_0 : i32, i32
  }
  func.func @transform_6(%arg0: i32) -> (i32, i32) {
    %c0_i32 = arith.constant 0 : i32
    %c0_i32_0 = arith.constant 0 : i32
    %c0_i32_1 = arith.constant 0 : i32
    return %c0_i32, %c0_i32_0 : i32, i32
  }
  func.func @transform_7(%arg0: i32) -> (i32, i32) {
    %c0_i32 = arith.constant 0 : i32
    %c0_i32_0 = arith.constant 0 : i32
    return %c0_i32, %arg0 : i32, i32
  }
}

</mosaic_0001>

<llo_original>
// kernel: tpu_custom_call.1
$region0: #{tpu_custom_call.1}
  #allocation0 [shape = 'u32[]', space=smem, size = 0x4, offset = 0x4, fixed_abs, tag = 'smem constant byte address 0x4 - core index']
  #allocation1 [shape = 'u32[144,128]{1,0:T(1,128)}', space=vmem, size = 0x12000, scoped, tag = 'internal scratch']
  #allocation2 [shape = 'f32[1,1]{1,0:T(1,128)S(6)}', space=smem, size = 0x200, scoped, tag = 'scoped memory for tpu_custom_call.1']
  %s0 = inlined_call_operand.hbm [shape: f32[8,27], index: 0, kind: input, shape index: {}]
  %s1 = inlined_call_operand.hbm [shape: bf16[27,64], index: 1, kind: input, shape index: {}]
  %s2 = inlined_call_operand.vmem [shape: f32[1,64], index: 2, kind: input, shape index: {}]
  %s3 = inlined_call_operand.hbm [shape: bf16[64,64], index: 3, kind: input, shape index: {}]
  %s4 = inlined_call_operand.vmem [shape: f32[1,64], index: 4, kind: input, shape index: {}]
  %s5 = inlined_call_operand.vmem [shape: f32[1,64], index: 5, kind: input, shape index: {}]
  %s6 = inlined_call_operand.<no memory space> [shape: f32[1,1], index: 6, kind: input, shape index: {}]
  %s7 = inlined_call_operand.hbm [shape: f32[1,8], index: 7, kind: output, shape index: {}]
  %s8 = sld [smem:[#allocation0]]
  $region50: #{tpu_custom_call.1} parent=0
    _
  %s10 = ssub.s32 1, %s8
  %s11 = scalar_select 0, %s10, %s8
  %12 = sst [smem:[#allocation2]] %s6
  $region1: #{tpu_custom_call.1} parent=0
    #allocation3 [shape = 'u8[4096]{0}', space=vmem, size = 0x1000, scoped, tag = 'input window, operand 0, single buffered']
    #allocation4 [shape = 's32[1]{0}', space=sflag, size = 0x4, scoped, tag = 'scoped memory for tpu_custom_call.1']
    #allocation5 [shape = 's32[1]{0}', space=sflag, size = 0x4, scoped, tag = 'scoped memory for tpu_custom_call.1']
    #allocation6 [shape = 'u8[8192]{0}', space=vmem, size = 0x2000, scoped, tag = 'input window, operand 1, single buffered']
    #allocation7 [shape = 's32[1]{0}', space=sflag, size = 0x4, scoped, tag = 'scoped memory for tpu_custom_call.1']
    #allocation8 [shape = 'u8[16384]{0}', space=vmem, size = 0x4000, scoped, tag = 'input window, operand 3, single buffered']
    #allocation9 [shape = 'u8[512]{0}', space=vmem, size = 0x400, scoped, tag = 'output window, operand 0, single buffered']
    %13 = vsyncpa [#allocation4], 0
    %14 = vsyncpa [#allocation7], 0
    %15 = vsyncpa [#allocation5], 0
    // Predicated region
    $region2: #{tpu_custom_call.1} parent=1 // pred_check
      _
    $region3: #{tpu_custom_call.1} parent=1 // pred_check_branch
      %17 = sbr.rel (0) target = $region5
    $region4: #{tpu_custom_call.1} parent=1 // pred_region
      %s19 = ssub.s32 128, 128
      %20 = vsyncadd [#allocation4], %s19
      %s22 = sshll.u32 [#allocation3], 4
      %s23 = int_to_ptr.vmem [resolvable:$true] %s22
      %25 = dma.hbm_to_vmem [thread:$0]  %s0, 128, %s23, [#allocation4]
    $region5: #{tpu_custom_call.1} parent=1 // pred_fallthru
      _
    // Predicated region
    $region6: #{tpu_custom_call.1} parent=1 // pred_check
      _
    $region7: #{tpu_custom_call.1} parent=1 // pred_check_branch
      %27 = sbr.rel (0) target = $region9
    $region8: #{tpu_custom_call.1} parent=1 // pred_region
      %s29 = ssub.s32 256, 256
      %30 = vsyncadd [#allocation7], %s29
      %s31 = sshll.u32 [#allocation6], 4
      %s32 = int_to_ptr.vmem [resolvable:$true] %s31
      %37 = dma.hbm_to_vmem [thread:$0]  %s1, 256, %s32, [#allocation7], 64, 64, 4
    $region9: #{tpu_custom_call.1} parent=1 // pred_fallthru
      _
    // Predicated region
    $region10: #{tpu_custom_call.1} parent=1 // pred_check
      _
    $region11: #{tpu_custom_call.1} parent=1 // pred_check_branch
      %39 = sbr.rel (0) target = $region13
    $region12: #{tpu_custom_call.1} parent=1 // pred_region
      _
    $region13: #{tpu_custom_call.1} parent=1 // pred_fallthru
      _
    // Predicated region
    $region14: #{tpu_custom_call.1} parent=1 // pred_check
      _
    $region15: #{tpu_custom_call.1} parent=1 // pred_check_branch
      %41 = sbr.rel (0) target = $region17
    $region16: #{tpu_custom_call.1} parent=1 // pred_region
      %s43 = ssub.s32 512, 512
      %44 = vsyncadd [#allocation7], %s43
      %s45 = sshll.u32 [#allocation8], 4
      %s46 = int_to_ptr.vmem [resolvable:$true] %s45
      %51 = dma.hbm_to_vmem [thread:$0]  %s3, 512, %s46, [#allocation7], 64, 64, 4
    $region17: #{tpu_custom_call.1} parent=1 // pred_fallthru
      _
    // Predicated region
    $region18: #{tpu_custom_call.1} parent=1 // pred_check
      _
    $region19: #{tpu_custom_call.1} parent=1 // pred_check_branch
      %53 = sbr.rel (0) target = $region21
    $region20: #{tpu_custom_call.1} parent=1 // pred_region
      _
    $region21: #{tpu_custom_call.1} parent=1 // pred_fallthru
      _
    // Predicated region
    $region22: #{tpu_custom_call.1} parent=1 // pred_check
      _
    $region23: #{tpu_custom_call.1} parent=1 // pred_check_branch
      %55 = sbr.rel (0) target = $region25
    $region24: #{tpu_custom_call.1} parent=1 // pred_region
      _
    $region25: #{tpu_custom_call.1} parent=1 // pred_fallthru
      _
    // Predicated region
    $region26: #{tpu_custom_call.1} parent=1 // pred_check
      _
    $region27: #{tpu_custom_call.1} parent=1 // pred_check_branch
      %57 = sbr.rel (0) target = $region29
    $region28: #{tpu_custom_call.1} parent=1 // pred_region
      _
    $region29: #{tpu_custom_call.1} parent=1 // pred_fallthru
      _
    // Predicated region
    $region30: #{tpu_custom_call.1} parent=1 // pred_check
      _
    $region31: #{tpu_custom_call.1} parent=1 // pred_check_branch
      %59 = sbr.rel (0) target = $region33
    $region32: #{tpu_custom_call.1} parent=1 // pred_region
      %60 = dma.done [#allocation4], 128
    $region33: #{tpu_custom_call.1} parent=1 // pred_fallthru
      _
    // Predicated region
    $region34: #{tpu_custom_call.1} parent=1 // pred_check
      _
    $region35: #{tpu_custom_call.1} parent=1 // pred_check_branch
      %62 = sbr.rel (0) target = $region37
    $region36: #{tpu_custom_call.1} parent=1 // pred_region
      %63 = dma.done [#allocation7], 256
    $region37: #{tpu_custom_call.1} parent=1 // pred_fallthru
      _
    // Predicated region
    $region38: #{tpu_custom_call.1} parent=1 // pred_check
      _
    $region39: #{tpu_custom_call.1} parent=1 // pred_check_branch
      %65 = sbr.rel (0) target = $region41
    $region40: #{tpu_custom_call.1} parent=1 // pred_region
      %66 = dma.done [#allocation7], 512
    $region41: #{tpu_custom_call.1} parent=1 // pred_fallthru
      _
    %v68 = vld [vmem:[#allocation3] sm:$0xff]
    %v69 = vpack.c.bf16 %v68, %v68
    %v70 = vld [vmem:[#allocation6] sm:$0xf]
    %v71 = vld [vmem:[#allocation6 + $0x4] sm:$0xf]
    %v72 = vld [vmem:[#allocation6 + $0x8] sm:$0xf]
    %v73 = vld [vmem:[#allocation6 + $0xc] sm:$0x3]
    %v74 = vld [vmem:[%s2] sm:$0x1]
    %v76 = vlaneseq
    %v77 = vshrl.u32 %v76, 7
    %v78 = vsub.s32 0, %v77
    %v79 = vrot.slane %v74, %v78
    %v85 = vunpack.c.l.b16 %v70
    %v86 = vunpack.c.l.b16 %v71
    %v87 = vunpack.c.l.b16 %v72
    %v88 = vunpack.c.l.b16 %v73
    %v89 = vpack.c.b16 %v86, %v85
    %v90 = vpack.c.b16 %v88, %v87
    %vm92 = vcmask 220160
    %v94 = vsel %vm92, %v69, 0
    %vm96 = vcmask 1044480
    %vm97 = vcmask 1045504
    %v98 = vsel %vm96, 4294967295, 65535
    %v99 = vsel %vm97, %v98, 0
    %v101 = vand.u32 %v90, %v99
    %103 = vmatprep.subr.bf16.mxu0 0
    %104 = vmatpush1.bf16.msra.mxu0 0
    %105 = vmatprep.subr.bf16.mxu0 0
    %106 = vmatpush1.bf16.msra.mxu0 0
    %107 = vmatprep.subr.bf16.mxu0 0
    %108 = vmatpush1.bf16.msra.mxu0 0
    %109 = vmatprep.subr.bf16.mxu0 0
    %110 = vmatpush1.bf16.msra.mxu0 0
    %111 = vmatprep.subr.bf16.mxu0 0
    %112 = vmatpush1.bf16.msra.mxu0 0
    %113 = vmatprep.subr.bf16.mxu0 0
    %114 = vmatpush1.bf16.msra.mxu0 0
    %115 = vmatprep.subr.bf16.mxu0 0
    %116 = vmatpush1.bf16.msra.mxu0 %v101
    %117 = vmatprep.subr.bf16.mxu0 0
    %118 = vmatpush1.bf16.msra.mxu0 %v89
    %119 = vmatprep.subr.bf16.mxu0 0
    %120 = vmatpush2.bf16.msra.mxu0 0
    %121 = vmatprep.subr.bf16.mxu0 0
    %122 = vmatpush2.bf16.msra.mxu0 0
    %123 = vmatprep.subr.bf16.mxu0 0
    %124 = vmatpush2.bf16.msra.mxu0 0
    %125 = vmatprep.subr.bf16.mxu0 0
    %126 = vmatpush2.bf16.msra.mxu0 0
    %127 = vmatprep.subr.bf16.mxu0 0
    %128 = vmatpush2.bf16.msra.mxu0 0
    %129 = vmatprep.subr.bf16.mxu0 0
    %130 = vmatpush2.bf16.msra.mxu0 0
    %131 = vmatprep.subr.bf16.mxu0 0
    %132 = vmatpush2.bf16.msra.mxu0 0
    %133 = vmatprep.subr.bf16.mxu0 0
    %134 = vmatpush2.bf16.msra.mxu0 0
    %135 = vmatprep.mubr.bf16.mxu0 0
    %136 = vmatmul.mubr.bf16.gmra.mxu0 %v94
    %v137 = vpop.f32.mrf.mxu0
    %v138 = vadd.f32 %v79, %v137
    %v139 = vpop.f32.mrf.mxu0
    %v140 = vpop.f32.mrf.mxu0
    %v141 = vpop.f32.mrf.mxu0
    %142 = vdwg.mxu0
    %v143 = vmax.f32 %v138, 0.0
    %v144 = vpack.c.bf16 %v143, %v143
    %v145 = vld [vmem:[#allocation8] sm:$0xf]
    %v146 = vld [vmem:[#allocation8 + $0x4] sm:$0xf]
    %v147 = vld [vmem:[#allocation8 + $0x8] sm:$0xf]
    %v148 = vld [vmem:[#allocation8 + $0xc] sm:$0xf]
    %v149 = vld [vmem:[#allocation8 + $0x10] sm:$0xf]
    %v150 = vld [vmem:[#allocation8 + $0x14] sm:$0xf]
    %v151 = vld [vmem:[#allocation8 + $0x18] sm:$0xf]
    %v152 = vld [vmem:[#allocation8 + $0x1c] sm:$0xf]
    %v153 = vld [vmem:[%s4] sm:$0x1]
    %v155 = vlaneseq
    %v156 = vshrl.u32 %v155, 7
    %v157 = vsub.s32 0, %v156
    %v158 = vrot.slane %v153, %v157
    %v168 = vunpack.c.l.b16 %v145
    %v169 = vunpack.c.l.b16 %v146
    %v170 = vunpack.c.l.b16 %v147
    %v171 = vunpack.c.l.b16 %v148
    %v172 = vunpack.c.l.b16 %v149
    %v173 = vunpack.c.l.b16 %v150
    %v174 = vunpack.c.l.b16 %v151
    %v175 = vunpack.c.l.b16 %v152
    %v176 = vpack.c.b16 %v169, %v168
    %v177 = vpack.c.b16 %v171, %v170
    %v178 = vpack.c.b16 %v173, %v172
    %v179 = vpack.c.b16 %v175, %v174
    %vm184 = vcmask 523264
    %v186 = vsel %vm184, %v144, 0
    %188 = vmatprep.subr.bf16.mxu0 0
    %189 = vmatpush1.bf16.msra.mxu0 0
    %190 = vmatprep.subr.bf16.mxu0 0
    %191 = vmatpush1.bf16.msra.mxu0 0
    %192 = vmatprep.subr.bf16.mxu0 0
    %193 = vmatpush1.bf16.msra.mxu0 0
    %194 = vmatprep.subr.bf16.mxu0 0
    %195 = vmatpush1.bf16.msra.mxu0 0
    %196 = vmatprep.subr.bf16.mxu0 0
    %197 = vmatpush1.bf16.msra.mxu0 %v179
    %198 = vmatprep.subr.bf16.mxu0 0
    %199 = vmatpush1.bf16.msra.mxu0 %v178
    %200 = vmatprep.subr.bf16.mxu0 0
    %201 = vmatpush1.bf16.msra.mxu0 %v177
    %202 = vmatprep.subr.bf16.mxu0 0
    %203 = vmatpush1.bf16.msra.mxu0 %v176
    %204 = vmatprep.subr.bf16.mxu0 0
    %205 = vmatpush2.bf16.msra.mxu0 0
    %206 = vmatprep.subr.bf16.mxu0 0
    %207 = vmatpush2.bf16.msra.mxu0 0
    %208 = vmatprep.subr.bf16.mxu0 0
    %209 = vmatpush2.bf16.msra.mxu0 0
    %210 = vmatprep.subr.bf16.mxu0 0
    %211 = vmatpush2.bf16.msra.mxu0 0
    %212 = vmatprep.subr.bf16.mxu0 0
    %213 = vmatpush2.bf16.msra.mxu0 0
    %214 = vmatprep.subr.bf16.mxu0 0
    %215 = vmatpush2.bf16.msra.mxu0 0
    %216 = vmatprep.subr.bf16.mxu0 0
    %217 = vmatpush2.bf16.msra.mxu0 0
    %218 = vmatprep.subr.bf16.mxu0 0
    %219 = vmatpush2.bf16.msra.mxu0 0
    %220 = vmatprep.mubr.bf16.mxu0 0
    %221 = vmatmul.mubr.bf16.gmra.mxu0 %v186
    %v222 = vpop.f32.mrf.mxu0
    %v223 = vadd.f32 %v158, %v222
    %v224 = vpop.f32.mrf.mxu0
    %v225 = vpop.f32.mrf.mxu0
    %v226 = vpop.f32.mrf.mxu0
    %227 = vdwg.mxu0
    %v228 = vmax.f32 %v223, 0.0
    %v229 = vld [vmem:[%s5] sm:$0x1]
    %s230 = sld [smem:[#allocation2]]
    %v231 = vstv %s230
    %v233 = vsel %vm184, %v229, 0
    %v236 = vsel %vm184, %v228, 0
    %238 = vmatprep.subr.mxu0 0.0
    %239 = vmatpush1.xpose.msra.mxu0 0.0
    %240 = vmatprep.subr.mxu0 0.0
    %241 = vmatpush1.xpose.msra.mxu0 0.0
    %242 = vmatprep.subr.mxu0 0.0
    %243 = vmatpush1.xpose.msra.mxu0 0.0
    %244 = vmatprep.subr.mxu0 0.0
    %245 = vmatpush1.xpose.msra.mxu0 0.0
    %246 = vmatprep.subr.mxu0 0.0
    %247 = vmatpush1.xpose.msra.mxu0 0.0
    %248 = vmatprep.subr.mxu0 0.0
    %249 = vmatpush1.xpose.msra.mxu0 0.0
    %250 = vmatprep.subr.mxu0 0.0
    %251 = vmatpush1.xpose.msra.mxu0 0.0
    %252 = vmatprep.subr.mxu0 0.0
    %253 = vmatpush1.xpose.msra.mxu0 0.0
    %254 = vmatprep.subr.mxu0 0.0
    %255 = vmatpush1.xpose.msra.mxu0 0.0
    %256 = vmatprep.subr.mxu0 0.0
    %257 = vmatpush1.xpose.msra.mxu0 0.0
    %258 = vmatprep.subr.mxu0 0.0
    %259 = vmatpush1.xpose.msra.mxu0 0.0
    %260 = vmatprep.subr.mxu0 0.0
    %261 = vmatpush1.xpose.msra.mxu0 0.0
    %262 = vmatprep.subr.mxu0 0.0
    %263 = vmatpush1.xpose.msra.mxu0 0.0
    %264 = vmatprep.subr.mxu0 0.0
    %265 = vmatpush1.xpose.msra.mxu0 0.0
    %266 = vmatprep.subr.mxu0 0.0
    %267 = vmatpush1.xpose.msra.mxu0 0.0
    %268 = vmatprep.subr.mxu0 0.0
    %269 = vmatpush1.xpose.msra.mxu0 %v236
    %270 = vmatprep.subr.mxu0 0.0
    %271 = vmatpush2.xpose.msra.mxu0 0.0
    %272 = vmatprep.subr.mxu0 0.0
    %273 = vmatpush2.xpose.msra.mxu0 0.0
    %274 = vmatprep.subr.mxu0 0.0
    %275 = vmatpush2.xpose.msra.mxu0 0.0
    %276 = vmatprep.subr.mxu0 0.0
    %277 = vmatpush2.xpose.msra.mxu0 0.0
    %278 = vmatprep.subr.mxu0 0.0
    %279 = vmatpush2.xpose.msra.mxu0 0.0
    %280 = vmatprep.subr.mxu0 0.0
    %281 = vmatpush2.xpose.msra.mxu0 0.0
    %282 = vmatprep.subr.mxu0 0.0
    %283 = vmatpush2.xpose.msra.mxu0 0.0
    %284 = vmatprep.subr.mxu0 0.0
    %285 = vmatpush2.xpose.msra.mxu0 0.0
    %286 = vmatprep.subr.mxu0 0.0
    %287 = vmatpush2.xpose.msra.mxu0 0.0
    %288 = vmatprep.subr.mxu0 0.0
    %289 = vmatpush2.xpose.msra.mxu0 0.0
    %290 = vmatprep.subr.mxu0 0.0
    %291 = vmatpush2.xpose.msra.mxu0 0.0
    %292 = vmatprep.subr.mxu0 0.0
    %293 = vmatpush2.xpose.msra.mxu0 0.0
    %294 = vmatprep.subr.mxu0 0.0
    %295 = vmatpush2.xpose.msra.mxu0 0.0
    %296 = vmatprep.subr.mxu0 0.0
    %297 = vmatpush2.xpose.msra.mxu0 0.0
    %298 = vmatprep.subr.mxu0 0.0
    %299 = vmatpush2.xpose.msra.mxu0 0.0
    %300 = vmatprep.subr.mxu0 0.0
    %301 = vmatpush2.xpose.msra.mxu0 0.0
    %302 = vmatprep.mubr.f32.mxu0 0.0
    %303 = vmatmul.mubr.f32.gmra.mxu0 %v233
    %v304 = vpop.f32.mrf.mxu0
    %v305 = vadd.f32 %v231, %v304
    %v306 = vpop.f32.mrf.mxu0
    %307 = vdwg.mxu0
    %v308 = vxor.u32 %v305, 2147483648
    %v309 = vmul.f32 %v308, 1.442695
    %v310 = vpow.pop %v309
    %v311 = vadd.f32 %v310, 1.0
    %v312 = vrcp.pop %v311
    %v313 = vmul.f32 1.0, %v312
    %vm314 = vcmask 57344
    %315 = vst.msk [vmem:[#allocation9] sm:$0x1] %vm314, %v313
    // Predicated region
    $region42: #{tpu_custom_call.1} parent=1 // pred_check
      _
    $region43: #{tpu_custom_call.1} parent=1 // pred_check_branch
      %317 = sbr.rel (0) target = $region45
    $region44: #{tpu_custom_call.1} parent=1 // pred_region
      %s319 = ssub.s32 16, 16
      %320 = vsyncadd [#allocation5], %s319
      %s322 = sshll.u32 [#allocation9], 4
      %s323 = int_to_ptr.vmem [resolvable:$true] %s322
      %325 = dma.vmem_to_hbm [thread:$0]  %s323, 16, %s7, [#allocation5]
    $region45: #{tpu_custom_call.1} parent=1 // pred_fallthru
      _
    // Predicated region
    $region46: #{tpu_custom_call.1} parent=1 // pred_check
      _
    $region47: #{tpu_custom_call.1} parent=1 // pred_check_branch
      %327 = sbr.rel (0) target = $region49
    $region48: #{tpu_custom_call.1} parent=1 // pred_region
      %328 = dma.done [#allocation5], 16
    $region49: #{tpu_custom_call.1} parent=1 // pred_fallthru
      _
    %329 = vsyncpa [#allocation4], 1
    %330 = vsyncpa [#allocation7], 1
    %331 = vsyncpa [#allocation5], 1

</llo_original>
